<compile_context>
chip_gen: v7x
topology: tpu7x:2x2x1
jax: 0.10.0
libtpu: 0.0.40
codegen_flags: <defaults>
</compile_context>

<pallas_src>
import math

import jax
import jax.numpy as jnp
from jax.experimental import pallas as pl
from jax.experimental.pallas import tpu as pltpu

EPS = 1e-12
MAX_D = 2048          # max slab width (lanes)
FALLBACK_D = 512      # slab width for the rare pad fallback (no divisor >= 128)
NUM_SHARDS = 2        # leading "parallel" grid axis: both TCs on v7x, harmless on 1-TC chips


def _choose_width(total: int) -> int:
    """Largest divisor of `total` <= MAX_D, preferring lane-aligned (x128) widths."""
    cap = min(MAX_D, total)
    d = cap - cap % 128
    while d >= 128:                      # lane-dense, zero-copy reshape
        if total % d == 0:
            return d
        d -= 128
    for d in range(cap, 0, -1):          # any divisor, still zero-copy
        if total % d == 0:
            return d
    return 1


def _target_block_bytes() -> int:
    """~1/8 of per-core VMEM (double-buffered -> ~1/4), clamped to [4, 16] MiB."""
    vmem = 128 * 1024 * 1024
    try:
        vmem = int(pltpu.get_tpu_info().vmem_capacity_bytes)
    except Exception:
        pass
    return int(min(16 * 1024 * 1024, max(4 * 1024 * 1024, vmem // 8)))


def _make_kernel(tm: int, rows: int, spb: int):
    def kernel(x_ref, o_ref):
        p = pl.program_id(0)
        i = pl.program_id(1)

        @pl.when(i == 0)
        def _init():
            o_ref[...] = jnp.zeros_like(o_ref)

        x = x_ref[...].astype(jnp.float32)
        neg_ent = -(x * jnp.log(x + EPS))

        # Un-clamped start row of this block.  The index_map clamps the DMA so
        # duplicated trailing blocks re-read the last real block; masking here
        # zeroes their contribution (and the garbage rows of the ragged block).
        row0 = (p * spb + i) * tm
        is_full = row0 + tm <= rows

        @pl.when(is_full)                        # fast path: every row is real data
        def _full():
            o_ref[0] += jnp.sum(neg_ent, axis=0, keepdims=True)

        @pl.when(jnp.logical_not(is_full))       # ragged / duplicate block: mask rows
        def _ragged():
            rid = row0 + jax.lax.broadcasted_iota(jnp.int32, (tm, 1), 0)
            masked = jnp.where(rid < rows, neg_ent, 0.0)
            o_ref[0] += jnp.sum(masked, axis=0, keepdims=True)

    return kernel


def entropy_loss_encap(x: jax.Array) -> jax.Array:
    """JAX/Pallas equivalent of EntropyLossEncap().forward(x).  Returns f32 scalar."""
    s = x.shape
    if not (2 <= len(s) <= 5):
        raise ValueError("wrong feature map size")
    C = s[1]
    total = math.prod(s)
    if total == 0:
        return jnp.array(jnp.nan, dtype=jnp.float32)   # torch mean() of empty -> nan
    n_rows = total // C                                 # rows of the channels-last view

    itemsize = jnp.dtype(x.dtype).itemsize
    packing = max(8, 8 * (4 // max(1, itemsize)))       # f32: 8, bf16: 16, int8/fp8: 32

    flat = x.reshape(-1)                                # no transpose, contiguous reshape
    D = _choose_width(total)
    if D >= 128:
        rows = total // D                               # zero-copy: D divides total exactly
    else:
        # TODO(synk): totals with no divisor >= 128 (near-prime) — rare; pad to a
        # lane-dense width, costing one extra copy of the input.
        padded = -(-total // FALLBACK_D) * FALLBACK_D
        if padded != total:
            flat = jnp.pad(flat, (0, padded - total))   # zeros contribute 0 to the sum
        D = FALLBACK_D
        rows = padded // D
    slab = flat.reshape(rows, D)

    # Row-block size: fill the per-generation block-byte target, honour sublane packing.
    padded_d = -(-D // 128) * 128                       # VMEM lane footprint of one row
    tm_target = _target_block_bytes() // (padded_d * itemsize)
    tm_target = max(packing, tm_target - tm_target % packing)
    if rows >= packing:
        tm = max(packing, min(tm_target, (rows // packing) * packing))
    else:
        tm = rows                                       # block row dim == full dim (legal)

    blocks = -(-rows // tm)
    shards = min(NUM_SHARDS, blocks)
    spb = -(-blocks // shards)                          # grid steps per shard

    block_bytes = tm * padded_d * itemsize
    vmem_limit = int(min(56 * 1024 * 1024, 2 * block_bytes + 16 * 1024 * 1024))

    kernel = _make_kernel(tm, rows, spb)
    out = pl.pallas_call(
        kernel,
        out_shape=jax.ShapeDtypeStruct((shards, 1, D), jnp.float32),
        grid_spec=pltpu.PrefetchScalarGridSpec(
            num_scalar_prefetch=0,
            grid=(shards, spb),                         # reduction axis innermost
            in_specs=[pl.BlockSpec(
                (tm, D),
                lambda p, i: (jnp.minimum(p * spb + i, blocks - 1), 0))],
            out_specs=pl.BlockSpec((1, 1, D), lambda p, i: (p, 0, 0)),
        ),
        compiler_params=pltpu.CompilerParams(
            dimension_semantics=("parallel", "arbitrary"),
            vmem_limit_bytes=vmem_limit,
        ),
    )(slab)

    # TODO(synk): could fold this tiny (<= 4 KiB) reduce into the kernel via an SMEM
    # scalar output per shard; kept outside for simplicity/robustness.
    return out.sum() / n_rows


def entropy_loss_encap_ref(x: jax.Array) -> jax.Array:
    """Pure-JAX reference (mirrors the PyTorch code exactly)."""
    s = x.shape
    l = len(s)
    if l == 2:
        score = x
    elif l == 3:
        score = jnp.transpose(x, (0, 2, 1))
    elif l == 4:
        score = jnp.transpose(x, (0, 2, 3, 1))
    elif l == 5:
        score = jnp.transpose(x, (0, 2, 3, 4, 1))
    else:
        raise ValueError("wrong feature map size")
    score = score.reshape(-1, s[1]).astype(jnp.float32)
    b = score * jnp.log(score + EPS)
    b = -1.0 * b.sum(axis=1)
    return b.mean()


if __name__ == "__main__":
    key = jax.random.PRNGKey(0)

    # 4-D NCHW case (attention-score-like maps: softmax over channels).
    logits4 = jax.random.normal(key, (2, 4, 16, 16), dtype=jnp.float32)
    x4 = jax.nn.softmax(logits4, axis=1)
    loss4 = jax.block_until_ready(entropy_loss_encap(x4))
    ref4 = entropy_loss_encap_ref(x4)
    assert jnp.allclose(loss4, ref4, rtol=1e-4, atol=1e-6), (loss4, ref4)

    # 3-D case, small odd element count (exercises the non-128 divisor path).
    logits3 = jax.random.normal(jax.random.fold_in(key, 1), (2, 8, 10), dtype=jnp.float32)
    x3 = jax.nn.softmax(logits3, axis=1)
    loss3 = jax.block_until_ready(entropy_loss_encap(x3))
    ref3 = entropy_loss_encap_ref(x3)
    assert jnp.allclose(loss3, ref3, rtol=1e-4, atol=1e-6), (loss3, ref3)

    # 4-D case whose row count is not a multiple of the row-block: exercises the
    # in-kernel ragged-block masking and both grid shards (no jnp.pad anywhere).
    logitsr = jax.random.normal(jax.random.fold_in(key, 2), (83, 4, 8, 16), dtype=jnp.float32)
    xr = jax.nn.softmax(logitsr, axis=1)
    lossr = jax.block_until_ready(entropy_loss_encap(xr))
    refr = entropy_loss_encap_ref(xr)
    assert jnp.allclose(lossr, refr, rtol=1e-4, atol=1e-6), (lossr, refr)

    print("KERNEL_OK")
</pallas_src>

<mosaic_0001>
module attributes {stable_mosaic.version = 11 : i64} {
  func.func @kernel(%arg0: i32, %arg1: i32, %arg2: memref<1x2048xf32, #tpu.memory_space<vmem>>, %arg3: memref<1x1x2048xf32, #tpu.memory_space<vmem>>) attributes {dimension_semantics = [#tpu.dimension_semantics<parallel>, #tpu.dimension_semantics<arbitrary>], iteration_bounds = array<i64: 1, 1>, scalar_prefetch = 0 : i64, scratch_operands = 0 : i64, tpu.core_type = #tpu.core_type<tc>, window_params = [{transform_indices = @transform_0, window_bounds = array<i64: 1, 2048>}, {transform_indices = @transform_1, window_bounds = array<i64: 1, 1, 2048>}]} {
    %c0_i32 = arith.constant 0 : i32
    %0 = arith.cmpi eq, %arg1, %c0_i32 : i32
    %1 = arith.extui %0 : i1 to i32
    %c0_i32_0 = arith.constant 0 : i32
    %2 = arith.cmpi ne, %1, %c0_i32_0 : i32
    scf.if %2 {
      %cst_8 = arith.constant 0.000000e+00 : f32
      %20 = vector.broadcast %cst_8 : f32 to vector<1x1x2048xf32>
      %c0_9 = arith.constant 0 : index
      %c0_10 = arith.constant 0 : index
      %c0_11 = arith.constant 0 : index
      %21 = vector.load %arg3[%c0_9, %c0_10, %c0_11] : memref<1x1x2048xf32, #tpu.memory_space<vmem>>, vector<1x1x2048xf32>
      tpu.vector_store %arg3[%c0_9, %c0_10, %c0_11], %20 {strides = array<i32>} : memref<1x1x2048xf32, #tpu.memory_space<vmem>>, vector<1x1x2048xf32>,
    } else {
    }
    %c0 = arith.constant 0 : index
    %c0_1 = arith.constant 0 : index
    %3 = vector.load %arg2[%c0, %c0_1] : memref<1x2048xf32, #tpu.memory_space<vmem>>, vector<1x2048xf32>
    %cst = arith.constant 9.99999996E-13 : f32
    %4 = vector.broadcast %cst : f32 to vector<1x2048xf32>
    %5 = arith.addf %3, %4 : vector<1x2048xf32>
    %6 = math.log %5 : vector<1x2048xf32>
    %7 = arith.mulf %3, %6 : vector<1x2048xf32>
    %cst_2 = arith.constant 0.000000e+00 : f32
    %8 = vector.broadcast %cst_2 : f32 to vector<1x2048xf32>
    %9 = arith.subf %8, %7 : vector<1x2048xf32>
    %c1_i32 = arith.constant 1 : i32
    %10 = arith.muli %arg0, %c1_i32 : i32
    %11 = arith.addi %10, %arg1 : i32
    %c1_i32_3 = arith.constant 1 : i32
    %12 = arith.muli %11, %c1_i32_3 : i32
    %c1_i32_4 = arith.constant 1 : i32
    %13 = arith.addi %12, %c1_i32_4 : i32
    %c1_i32_5 = arith.constant 1 : i32
    %14 = arith.cmpi sle, %13, %c1_i32_5 : i32
    %15 = arith.extui %14 : i1 to i32
    %c0_i32_6 = arith.constant 0 : i32
    %16 = arith.cmpi ne, %15, %c0_i32_6 : i32
    scf.if %16 {
      %c0_8 = arith.constant 0 : index
      %c0_9 = arith.constant 0 : index
      %c0_10 = arith.constant 0 : index
      %20 = vector.load %arg3[%c0_8, %c0_9, %c0_10] : memref<1x1x2048xf32, #tpu.memory_space<vmem>>, vector<1x1x2048xf32>
      %21 = vector.shape_cast %20 : vector<1x1x2048xf32> to vector<1x2048xf32>
      %cst_11 = arith.constant dense<0.000000e+00> : vector<2048xf32>
      %22 = vector.multi_reduction <add>, %9, %cst_11 [0] : vector<1x2048xf32> to vector<2048xf32>
      %23 = vector.shape_cast %22 : vector<2048xf32> to vector<1x2048xf32>
      %24 = arith.addf %21, %23 : vector<1x2048xf32>
      %c0_12 = arith.constant 0 : index
      %c0_13 = arith.constant 0 : index
      %c0_14 = arith.constant 0 : index
      %25 = vector.load %arg3[%c0_12, %c0_13, %c0_14] : memref<1x1x2048xf32, #tpu.memory_space<vmem>>, vector<1x1x2048xf32>
      %26 = vector.shape_cast %25 : vector<1x1x2048xf32> to vector<1x2048xf32>
      %27 = vector.shape_cast %24 : vector<1x2048xf32> to vector<1x1x2048xf32>
      tpu.vector_store %arg3[%c0_12, %c0_13, %c0_14], %27 {strides = array<i32>} : memref<1x1x2048xf32, #tpu.memory_space<vmem>>, vector<1x1x2048xf32>,
    } else {
    }
    %true = arith.constant true
    %17 = arith.xori %14, %true : i1
    %18 = arith.extui %17 : i1 to i32
    %c0_i32_7 = arith.constant 0 : i32
    %19 = arith.cmpi ne, %18, %c0_i32_7 : i32
    scf.if %19 {
      %20 = tpu.iota {dimensions = array<i32: 0>} : vector<1x1xi32>
      %21 = vector.broadcast %12 : i32 to vector<1x1xi32>
      %22 = arith.addi %21, %20 : vector<1x1xi32>
      %c1_i32_8 = arith.constant 1 : i32
      %23 = vector.broadcast %c1_i32_8 : i32 to vector<1x1xi32>
      %24 = arith.cmpi slt, %22, %23 : vector<1x1xi32>
      %cst_9 = arith.constant 0.000000e+00 : f32
      %25 = vector.shape_cast %24 : vector<1x1xi1> to vector<1x1xi1>
      %26 = vector.broadcast %25 : vector<1x1xi1> to vector<1x2048xi1>
      %27 = vector.broadcast %cst_9 : f32 to vector<1x2048xf32>
      %28 = arith.select %26, %9, %27 : vector<1x2048xi1>, vector<1x2048xf32>
      %c0_10 = arith.constant 0 : index
      %c0_11 = arith.constant 0 : index
      %c0_12 = arith.constant 0 : index
      %29 = vector.load %arg3[%c0_10, %c0_11, %c0_12] : memref<1x1x2048xf32, #tpu.memory_space<vmem>>, vector<1x1x2048xf32>
      %30 = vector.shape_cast %29 : vector<1x1x2048xf32> to vector<1x2048xf32>
      %cst_13 = arith.constant dense<0.000000e+00> : vector<2048xf32>
      %31 = vector.multi_reduction <add>, %28, %cst_13 [0] : vector<1x2048xf32> to vector<2048xf32>
      %32 = vector.shape_cast %31 : vector<2048xf32> to vector<1x2048xf32>
      %33 = arith.addf %30, %32 : vector<1x2048xf32>
      %c0_14 = arith.constant 0 : index
      %c0_15 = arith.constant 0 : index
      %c0_16 = arith.constant 0 : index
      %34 = vector.load %arg3[%c0_14, %c0_15, %c0_16] : memref<1x1x2048xf32, #tpu.memory_space<vmem>>, vector<1x1x2048xf32>
      %35 = vector.shape_cast %34 : vector<1x1x2048xf32> to vector<1x2048xf32>
      %36 = vector.shape_cast %33 : vector<1x2048xf32> to vector<1x1x2048xf32>
      tpu.vector_store %arg3[%c0_14, %c0_15, %c0_16], %36 {strides = array<i32>} : memref<1x1x2048xf32, #tpu.memory_space<vmem>>, vector<1x1x2048xf32>,
    } else {
    }
    return
  }
  func.func @transform_0(%arg0: i32, %arg1: i32) -> (i32, i32) {
    %c1_i32 = arith.constant 1 : i32
    %0 = arith.muli %arg0, %c1_i32 : i32
    %1 = arith.addi %0, %arg1 : i32
    %c0_i32 = arith.constant 0 : i32
    %2 = arith.minsi %1, %c0_i32 : i32
    %c0_i32_0 = arith.constant 0 : i32
    %c0_i32_1 = arith.constant 0 : i32
    return %2, %c0_i32_0 : i32, i32
  }
  func.func @transform_1(%arg0: i32, %arg1: i32) -> (i32, i32, i32) {
    %c0_i32 = arith.constant 0 : i32
    %c0_i32_0 = arith.constant 0 : i32
    %c0_i32_1 = arith.constant 0 : i32
    return %arg0, %c0_i32, %c0_i32_0 : i32, i32, i32
  }
}

</mosaic_0001>

<llo_original>
// kernel: tpu_custom_call.1
$region0: #{tpu_custom_call.1}
  #allocation0 [shape = 'u32[]', space=smem, size = 0x4, offset = 0x4, fixed_abs, tag = 'smem constant byte address 0x4 - core index']
  #allocation1 [shape = 'u32[144,128]{1,0:T(1,128)}', space=vmem, size = 0x12000, scoped, tag = 'internal scratch']
  %s0 = inlined_call_operand.hbm [shape: f32[1,2048], index: 0, kind: input, shape index: {}]
  %s1 = inlined_call_operand.hbm [shape: f32[1,1,2048], index: 1, kind: output, shape index: {}]
  %s2 = sld [smem:[#allocation0]]
  $region30: #{tpu_custom_call.1} parent=0
    _
  %s4 = ssub.s32 1, %s2
  %s5 = scalar_select 0, %s4, %s2
  $region1: #{tpu_custom_call.1} parent=0
    #allocation2 [shape = 'u8[8192]{0}', space=vmem, size = 0x2000, scoped, tag = 'input window, operand 0, single buffered']
    #allocation3 [shape = 's32[1]{0}', space=sflag, size = 0x4, scoped, tag = 'scoped memory for tpu_custom_call.1']
    #allocation4 [shape = 's32[1]{0}', space=sflag, size = 0x4, scoped, tag = 'scoped memory for tpu_custom_call.1']
    #allocation5 [shape = 'u8[8192]{0}', space=vmem, size = 0x2000, scoped, tag = 'output window, operand 0, single buffered']
    %6 = vsyncpa [#allocation3], 0
    %7 = vsyncpa [#allocation4], 0
    // Predicated region
    $region2: #{tpu_custom_call.1} parent=1 // pred_check
      _
    $region3: #{tpu_custom_call.1} parent=1 // pred_check_branch
      %9 = sbr.rel (0) target = $region5
    $region4: #{tpu_custom_call.1} parent=1 // pred_region
      %s10 = sadd.s32 0, 0
      %p11 = scmp.lt.s32.totalorder %s10, 0
      %s12 = scalar_select %p11, %s10, 0
      %s14 = ssub.s32 256, 256
      %15 = vsyncadd [#allocation3], %s14
      %s16 = smul.addr %s12, 16
      %s17 = smul.addr %s16, 16
      %s18 = scalar_lea.hbm %s0, %s17
      %s20 = sshll.u32 [#allocation2], 4
      %s21 = int_to_ptr.vmem [resolvable:$true] %s20
      %23 = dma.hbm_to_vmem [thread:$0]  %s18, 256, %s21, [#allocation3]
    $region5: #{tpu_custom_call.1} parent=1 // pred_fallthru
      _
    // Predicated region
    $region6: #{tpu_custom_call.1} parent=1 // pred_check
      _
    $region7: #{tpu_custom_call.1} parent=1 // pred_check_branch
      %25 = sbr.rel (0) target = $region9
    $region8: #{tpu_custom_call.1} parent=1 // pred_region
      %26 = dma.done [#allocation3], 256
    $region9: #{tpu_custom_call.1} parent=1 // pred_fallthru
      _
    %s27 = sadd.s32 0, 0
    %p28 = scmp.lt.s32.totalorder %s27, 0
    %s29 = scalar_select %p28, %s27, 0
    %p30 = scmp.eq.s32.totalorder 0, 0
    // Predicated region
    $region10: #{tpu_custom_call.1} parent=1 // pred_check
      %p31 = pneg %p30
    $region11: #{tpu_custom_call.1} parent=1 // pred_check_branch
      %33 = sbr.rel (%p31) target = $region13
    $region12: #{tpu_custom_call.1} parent=1 // pred_region
      %34 = vst [vmem:[#allocation5] sm:$0xff] 0.0
      %35 = vst [vmem:[#allocation5 + $0x8] sm:$0xff] 0.0
    $region13: #{tpu_custom_call.1} parent=1 // pred_fallthru
      _
    %v36 = vld [vmem:[#allocation2] sm:$0xff]
    %v37 = vld [vmem:[#allocation2 + $0x8] sm:$0xff]
    %v38 = vadd.f32 %v36, 1e-12
    %v39 = vadd.f32 %v37, 1e-12
    %v40 = vlog2.pop %v38
    %v41 = vmul.f32 %v40, 0.6931472
    %v42 = vlog2.pop %v39
    %v43 = vmul.f32 %v42, 0.6931472
    %v44 = vmul.f32 %v36, %v41
    %v45 = vmul.f32 %v37, %v43
    %v46 = vsub.f32 0.0, %v44
    %v47 = vsub.f32 0.0, %v45
    %s48 = sadd.s32 0, 0
    %s49 = sadd.s32 %s48, 1
    %p50 = scmp.le.s32.totalorder %s49, 1
    // Predicated region
    $region14: #{tpu_custom_call.1} parent=1 // pred_check
      %p51 = pneg %p50
    $region15: #{tpu_custom_call.1} parent=1 // pred_check_branch
      %53 = sbr.rel (%p51) target = $region17
    $region16: #{tpu_custom_call.1} parent=1 // pred_region
      %v54 = vld [vmem:[#allocation5] sm:$0xff]
      %v55 = vld [vmem:[#allocation5 + $0x8] sm:$0xff]
      %v56 = vadd.f32 %v46, 0.0
      %v57 = vadd.f32 %v47, 0.0
      %v58 = vadd.f32 %v54, %v56
      %v59 = vadd.f32 %v55, %v57
      %60 = vst [vmem:[#allocation5] sm:$0xff] %v58
      %61 = vst [vmem:[#allocation5 + $0x8] sm:$0xff] %v59
    $region17: #{tpu_custom_call.1} parent=1 // pred_fallthru
      _
    %p62 = scmp.gt.s32.totalorder %s49, 1
    // Predicated region
    $region18: #{tpu_custom_call.1} parent=1 // pred_check
      %p63 = pneg %p62
    $region19: #{tpu_custom_call.1} parent=1 // pred_check_branch
      %65 = sbr.rel (%p63) target = $region21
    $region20: #{tpu_custom_call.1} parent=1 // pred_region
      %v66 = vlaneseq
      %v67 = vshrl.u32 %v66, 7
      %v68 = vstv %s48
      %v69 = vadd.s32 %v68, %v67
      %vm70 = vcmp.lt.s32.totalorder %v69, 1
      %v71 = vsel %vm70, 1, 0
      %vm72 = vcmp.eq.s32.totalorder %v71, 1
      %v75 = vlaneseq
      %v76 = vshrl.u32 %v75, 7
      %v77 = vsub.s32 0, %v76
      %v78 = vrot.slane %v46, %v77
      %v79 = vlaneseq
      %v80 = vshrl.u32 %v79, 7
      %v81 = vsub.s32 1, %v80
      %v82 = vrot.slane %v46, %v81
      %v83 = vlaneseq
      %v84 = vshrl.u32 %v83, 7
      %v85 = vsub.s32 2, %v84
      %v86 = vrot.slane %v46, %v85
      %v87 = vlaneseq
      %v88 = vshrl.u32 %v87, 7
      %v89 = vsub.s32 3, %v88
      %v90 = vrot.slane %v46, %v89
      %v91 = vlaneseq
      %v92 = vshrl.u32 %v91, 7
      %v93 = vsub.s32 4, %v92
      %v94 = vrot.slane %v46, %v93
      %v95 = vlaneseq
      %v96 = vshrl.u32 %v95, 7
      %v97 = vsub.s32 5, %v96
      %v98 = vrot.slane %v46, %v97
      %v99 = vlaneseq
      %v100 = vshrl.u32 %v99, 7
      %v101 = vsub.s32 6, %v100
      %v102 = vrot.slane %v46, %v101
      %v103 = vlaneseq
      %v104 = vshrl.u32 %v103, 7
      %v105 = vsub.s32 7, %v104
      %v106 = vrot.slane %v46, %v105
      %v107 = vlaneseq
      %v108 = vshrl.u32 %v107, 7
      %v109 = vsub.s32 0, %v108
      %v110 = vrot.slane %v47, %v109
      %v111 = vlaneseq
      %v112 = vshrl.u32 %v111, 7
      %v113 = vsub.s32 1, %v112
      %v114 = vrot.slane %v47, %v113
      %v115 = vlaneseq
      %v116 = vshrl.u32 %v115, 7
      %v117 = vsub.s32 2, %v116
      %v118 = vrot.slane %v47, %v117
      %v119 = vlaneseq
      %v120 = vshrl.u32 %v119, 7
      %v121 = vsub.s32 3, %v120
      %v122 = vrot.slane %v47, %v121
      %v123 = vlaneseq
      %v124 = vshrl.u32 %v123, 7
      %v125 = vsub.s32 4, %v124
      %v126 = vrot.slane %v47, %v125
      %v127 = vlaneseq
      %v128 = vshrl.u32 %v127, 7
      %v129 = vsub.s32 5, %v128
      %v130 = vrot.slane %v47, %v129
      %v131 = vlaneseq
      %v132 = vshrl.u32 %v131, 7
      %v133 = vsub.s32 6, %v132
      %v134 = vrot.slane %v47, %v133
      %v135 = vlaneseq
      %v136 = vshrl.u32 %v135, 7
      %v137 = vsub.s32 7, %v136
      %v138 = vrot.slane %v47, %v137
      %v155 = vsel %vm72, %v78, 0.0
      %v156 = vsel %vm72, %v82, 0.0
      %v157 = vsel %vm72, %v86, 0.0
      %v158 = vsel %vm72, %v90, 0.0
      %v159 = vsel %vm72, %v94, 0.0
      %v160 = vsel %vm72, %v98, 0.0
      %v161 = vsel %vm72, %v102, 0.0
      %v162 = vsel %vm72, %v106, 0.0
      %v163 = vsel %vm72, %v110, 0.0
      %v164 = vsel %vm72, %v114, 0.0
      %v165 = vsel %vm72, %v118, 0.0
      %v166 = vsel %vm72, %v122, 0.0
      %v167 = vsel %vm72, %v126, 0.0
      %v168 = vsel %vm72, %v130, 0.0
      %v169 = vsel %vm72, %v134, 0.0
      %v170 = vsel %vm72, %v138, 0.0
      %v171 = vld [vmem:[#allocation5] sm:$0xff]
      %v172 = vld [vmem:[#allocation5 + $0x8] sm:$0xff]
      %v173 = vadd.f32 %v155, 0.0
      %v174 = vadd.f32 %v156, 0.0
      %v175 = vadd.f32 %v157, 0.0
      %v176 = vadd.f32 %v158, 0.0
      %v177 = vadd.f32 %v159, 0.0
      %v178 = vadd.f32 %v160, 0.0
      %v179 = vadd.f32 %v161, 0.0
      %v180 = vadd.f32 %v162, 0.0
      %v181 = vadd.f32 %v163, 0.0
      %v182 = vadd.f32 %v164, 0.0
      %v183 = vadd.f32 %v165, 0.0
      %v184 = vadd.f32 %v166, 0.0
      %v185 = vadd.f32 %v167, 0.0
      %v186 = vadd.f32 %v168, 0.0
      %v187 = vadd.f32 %v169, 0.0
      %v188 = vadd.f32 %v170, 0.0
      %v205 = vcombine.low %v173, %v174
      %v206 = vcombine.low %v175, %v176
      %v207 = vcombine.low %v177, %v178
      %v208 = vcombine.low %v179, %v180
      %v210 = vunpack.c.l.s4 1966171168
      %v211 = vunpack.c.0.s8 %v210
      %v212 = vlaneseq
      %v213 = vshrl.u32 %v212, 7
      %v214 = vsub.s32 %v211, %v213
      %v215 = vrot.slane %v205, %v214
      %v217 = vunpack.c.l.s4 1966171168
      %v218 = vunpack.c.0.s8 %v217
      %v219 = vlaneseq
      %v220 = vshrl.u32 %v219, 7
      %v221 = vsub.s32 %v218, %v220
      %v222 = vrot.slane %v206, %v221
      %v224 = vunpack.c.l.s4 1966171168
      %v225 = vunpack.c.0.s8 %v224
      %v226 = vlaneseq
      %v227 = vshrl.u32 %v226, 7
      %v228 = vsub.s32 %v225, %v227
      %v229 = vrot.slane %v207, %v228
      %v231 = vunpack.c.l.s4 1966171168
      %v232 = vunpack.c.0.s8 %v231
      %v233 = vlaneseq
      %v234 = vshrl.u32 %v233, 7
      %v235 = vsub.s32 %v232, %v234
      %v236 = vrot.slane %v208, %v235
      %v237 = vcombine.low %v215, %v222
      %v238 = vcombine.low %v229, %v236
      %v240 = vunpack.c.l.s4 1966171168
      %v241 = vunpack.c.0.s8 %v240
      %v242 = vlaneseq
      %v243 = vshrl.u32 %v242, 7
      %v244 = vsub.s32 %v241, %v243
      %v245 = vrot.slane %v237, %v244
      %v247 = vunpack.c.l.s4 1966171168
      %v248 = vunpack.c.0.s8 %v247
      %v249 = vlaneseq
      %v250 = vshrl.u32 %v249, 7
      %v251 = vsub.s32 %v248, %v250
      %v252 = vrot.slane %v238, %v251
      %v253 = vcombine.low %v245, %v252
      %v254 = vcombine.low %v181, %v182
      %v255 = vcombine.low %v183, %v184
      %v256 = vcombine.low %v185, %v186
      %v257 = vcombine.low %v187, %v188
      %v259 = vunpack.c.l.s4 1966171168
      %v260 = vunpack.c.0.s8 %v259
      %v261 = vlaneseq
      %v262 = vshrl.u32 %v261, 7
      %v263 = vsub.s32 %v260, %v262
      %v264 = vrot.slane %v254, %v263
      %v266 = vunpack.c.l.s4 1966171168
      %v267 = vunpack.c.0.s8 %v266
      %v268 = vlaneseq
      %v269 = vshrl.u32 %v268, 7
      %v270 = vsub.s32 %v267, %v269
      %v271 = vrot.slane %v255, %v270
      %v273 = vunpack.c.l.s4 1966171168
      %v274 = vunpack.c.0.s8 %v273
      %v275 = vlaneseq
      %v276 = vshrl.u32 %v275, 7
      %v277 = vsub.s32 %v274, %v276
      %v278 = vrot.slane %v256, %v277
      %v280 = vunpack.c.l.s4 1966171168
      %v281 = vunpack.c.0.s8 %v280
      %v282 = vlaneseq
      %v283 = vshrl.u32 %v282, 7
      %v284 = vsub.s32 %v281, %v283
      %v285 = vrot.slane %v257, %v284
      %v286 = vcombine.low %v264, %v271
      %v287 = vcombine.low %v278, %v285
      %v289 = vunpack.c.l.s4 1966171168
      %v290 = vunpack.c.0.s8 %v289
      %v291 = vlaneseq
      %v292 = vshrl.u32 %v291, 7
      %v293 = vsub.s32 %v290, %v292
      %v294 = vrot.slane %v286, %v293
      %v296 = vunpack.c.l.s4 1966171168
      %v297 = vunpack.c.0.s8 %v296
      %v298 = vlaneseq
      %v299 = vshrl.u32 %v298, 7
      %v300 = vsub.s32 %v297, %v299
      %v301 = vrot.slane %v287, %v300
      %v302 = vcombine.low %v294, %v301
      %v305 = vadd.f32 %v171, %v253
      %v306 = vadd.f32 %v172, %v302
      %307 = vst [vmem:[#allocation5] sm:$0xff] %v305
      %308 = vst [vmem:[#allocation5 + $0x8] sm:$0xff] %v306
    $region21: #{tpu_custom_call.1} parent=1 // pred_fallthru
      _
    // Predicated region
    $region22: #{tpu_custom_call.1} parent=1 // pred_check
      _
    $region23: #{tpu_custom_call.1} parent=1 // pred_check_branch
      %310 = sbr.rel (0) target = $region25
    $region24: #{tpu_custom_call.1} parent=1 // pred_region
      %s312 = ssub.s32 256, 256
      %313 = vsyncadd [#allocation4], %s312
      %s315 = sshll.u32 [#allocation5], 4
      %s316 = int_to_ptr.vmem [resolvable:$true] %s315
      %318 = dma.vmem_to_hbm [thread:$0]  %s316, 256, %s1, [#allocation4]
    $region25: #{tpu_custom_call.1} parent=1 // pred_fallthru
      _
    // Predicated region
    $region26: #{tpu_custom_call.1} parent=1 // pred_check
      _
    $region27: #{tpu_custom_call.1} parent=1 // pred_check_branch
      %320 = sbr.rel (0) target = $region29
    $region28: #{tpu_custom_call.1} parent=1 // pred_region
      %321 = dma.done [#allocation4], 256
    $region29: #{tpu_custom_call.1} parent=1 // pred_fallthru
      _
    %322 = vsyncpa [#allocation3], 1
    %323 = vsyncpa [#allocation4], 1

</llo_original>
